<compile_context>
chip_gen: v7x
topology: tpu7x:2x2x1
jax: 0.10.0
libtpu: 0.0.40
codegen_flags: <defaults>
</compile_context>

<pallas_src>
import functools
from typing import NamedTuple

import jax
import jax.numpy as jnp
import numpy as np
from jax.experimental import pallas as pl
from jax.experimental.pallas import tpu as pltpu

_LANE = 128
_SUBLANE = 8


def _round_up(n, m):
    return ((n + m - 1) // m) * m


class PackedParams(NamedTuple):
    w: jax.Array          # (n_layers, fpad, fpad), param_dtype, zero-padded
    b: jax.Array          # (n_layers, 1, fpad),    float32,     zero-padded
    input_dim: int
    output_dim: int


def pack_params(params, *, param_dtype=jnp.bfloat16):
    """Pack the 9 (W, b) pairs ONCE (at init time) into lane-padded, stacked arrays.

    params: list of (W, b) with W shaped (in_features, out_features).
    Zero rows/cols + zero bias + ReLU(0)=0 keep the real columns exact.
    """
    n_layers = len(params)
    input_dim = int(params[0][0].shape[0])
    output_dim = int(params[-1][0].shape[1])
    feat = max([input_dim, output_dim]
               + [int(w.shape[0]) for w, _ in params]
               + [int(w.shape[1]) for w, _ in params])
    fpad = _round_up(feat, _LANE)   # keep at 128 lanes; do NOT pad to 256

    w_pack = np.zeros((n_layers, fpad, fpad), dtype=np.float32)
    b_pack = np.zeros((n_layers, 1, fpad), dtype=np.float32)
    for i, (w, b) in enumerate(params):
        w_np = np.asarray(w, dtype=np.float32)
        b_np = np.asarray(b, dtype=np.float32)
        w_pack[i, : w_np.shape[0], : w_np.shape[1]] = w_np
        b_pack[i, 0, : b_np.shape[0]] = b_np

    return PackedParams(
        w=jnp.asarray(w_pack, dtype=param_dtype),
        b=jnp.asarray(b_pack, dtype=jnp.float32),   # bias-add stays f32 (v5e: no bf16 VPU)
        input_dim=input_dim,
        output_dim=output_dim,
    )


def _mlp_kernel(x_ref, w_ref, b_ref, o_ref, *, input_dim, output_dim):
    """x_ref: (block_b, input_dim) f32; w_ref: (L, F, F) param_dtype;
       b_ref: (L, 1, F) f32; o_ref: (block_b, output_dim) f32."""
    n_layers = w_ref.shape[0]
    x = x_ref[...]

    # Layer 0: x arrives at native lane width; use only the first input_dim
    # rows of the (zero-padded) first weight so the contraction K = input_dim.
    w0 = w_ref[0][:input_dim, :]
    h = jnp.dot(x.astype(w0.dtype), w0, preferred_element_type=jnp.float32)
    h = jnp.maximum(h + b_ref[0], 0.0)

    # Hidden layers fc2..fc8 (static unroll; bf16 MXU, f32 accumulate/VPU).
    for layer in range(1, n_layers - 1):
        w = w_ref[layer]
        h = jnp.dot(h.astype(w.dtype), w, preferred_element_type=jnp.float32)
        h = jnp.maximum(h + b_ref[layer], 0.0)

    # Head: no ReLU; store only the real output columns (8x less HBM writeback).
    w_last = w_ref[n_layers - 1]
    h = jnp.dot(h.astype(w_last.dtype), w_last, preferred_element_type=jnp.float32)
    h = h + b_ref[n_layers - 1]
    o_ref[...] = h[:, :output_dim].astype(o_ref.dtype)


def eight_layer_network(x, packed: PackedParams, *, block_b=None):
    """Fused forward pass. x: (B, input_dim) float32; packed: from pack_params()."""
    B, input_dim = x.shape
    assert input_dim == packed.input_dim, "x feature dim does not match packed params"
    n_layers, fpad, _ = packed.w.shape
    output_dim = packed.output_dim

    # Batch tile: large (amortizes ~0.35us/step + 9 dependent MXU drains per
    # step), multiple of 8, capped so the grid has >=2 steps whenever possible
    # (v7x megacore sharding; free on single-TC v5e/v6e).
    if block_b is None:
        block_b = 2048
    two_step_cap = _round_up(max((B + 1) // 2, _SUBLANE), _SUBLANE)
    block_b = max(_SUBLANE, min(_round_up(block_b, _SUBLANE), two_step_cap))
    b_pad = _round_up(B, block_b)

    x = x.astype(jnp.float32)
    if b_pad != B:
        x = jnp.pad(x, ((0, b_pad - B), (0, 0)))    # row-pad only; no lane padding in HBM

    grid = (b_pad // block_b,)

    # Explicit VMEM budget with headroom for v7x's 64 MiB physical / 32 MiB scoped.
    w_bytes = int(packed.w.size) * packed.w.dtype.itemsize
    b_bytes = int(packed.b.size) * 4
    est = (2 * block_b * (input_dim + output_dim) * 4   # double-buffered in/out tiles
           + 2 * (w_bytes + b_bytes)                    # resident params
           + 6 * block_b * fpad * 4)                    # live h + dot intermediates
    vmem_limit = int(min(40 << 20, max(16 << 20, 2 * est)))

    kernel = functools.partial(_mlp_kernel, input_dim=input_dim, output_dim=output_dim)

    out = pl.pallas_call(
        kernel,
        out_shape=jax.ShapeDtypeStruct((b_pad, output_dim), jnp.float32),
        grid_spec=pltpu.PrefetchScalarGridSpec(
            num_scalar_prefetch=0,
            grid=grid,
            in_specs=[
                pl.BlockSpec((block_b, input_dim), lambda i: (i, 0)),        # x tile (native lanes)
                pl.BlockSpec((n_layers, fpad, fpad), lambda i: (0, 0, 0)),   # packed W (resident)
                pl.BlockSpec((n_layers, 1, fpad), lambda i: (0, 0, 0)),      # packed b (resident)
            ],
            out_specs=pl.BlockSpec((block_b, output_dim), lambda i: (i, 0)),
        ),
        compiler_params=pltpu.CompilerParams(
            dimension_semantics=("parallel",),
            vmem_limit_bytes=vmem_limit,
        ),
    )(x, packed.w, packed.b)

    return out[:B] if b_pad != B else out


def init_params(key, input_dim, output_dim, hidden_units=40):
    """PyTorch-style uniform(+/- 1/sqrt(fan_in)) init, stored as (in, out)."""
    dims = [input_dim] + [hidden_units] * 8 + [output_dim]
    params = []
    for i in range(9):
        key, kw, kb = jax.random.split(key, 3)
        fan_in, fan_out = dims[i], dims[i + 1]
        bound = 1.0 / jnp.sqrt(fan_in)
        w = jax.random.uniform(kw, (fan_in, fan_out), jnp.float32, -bound, bound)
        b = jax.random.uniform(kb, (fan_out,), jnp.float32, -bound, bound)
        params.append((w, b))
    return params


def reference_forward(x, params):
    h = x
    for i, (w, b) in enumerate(params):
        h = h @ w + b
        if i < len(params) - 1:
            h = jnp.maximum(h, 0.0)
    return h


if __name__ == "__main__":
    key = jax.random.PRNGKey(0)
    k_x, k_p = jax.random.split(key)

    batch, input_dim, output_dim, hidden = 12, 32, 16, 40
    x = jax.random.normal(k_x, (batch, input_dim), jnp.float32)
    params = init_params(k_p, input_dim, output_dim, hidden)

    # Pack ONCE (in real use these live alongside the model, not in the forward).
    packed_f32 = pack_params(params, param_dtype=jnp.float32)    # exact mode
    packed_bf16 = pack_params(params, param_dtype=jnp.bfloat16)  # default fast mode

    ref = reference_forward(x, params)

    # Exact f32 path; block_b=8 with batch=12 exercises the multi-step
    # "parallel" grid and the row-padded tail tile.
    out_f32 = jax.block_until_ready(eight_layer_network(x, packed_f32, block_b=8))
    assert out_f32.shape == (batch, output_dim)
    assert jnp.allclose(out_f32, ref, atol=1e-5, rtol=1e-5), "f32 mismatch vs JAX reference"

    # Fast bf16-weight / f32-accumulate path (looser tolerance by construction).
    out_bf16 = jax.block_until_ready(eight_layer_network(x, packed_bf16, block_b=8))
    rel_err = jnp.max(jnp.abs(out_bf16 - ref)) / (jnp.max(jnp.abs(ref)) + 1e-6)
    assert out_bf16.shape == (batch, output_dim)
    assert rel_err < 5e-2, f"bf16 path relative error too large: {rel_err}"

    print("KERNEL_OK")
</pallas_src>

<mosaic_0001>
module attributes {stable_mosaic.version = 11 : i64} {
  func.func @_mlp_kernel(%arg0: i32, %arg1: memref<8x32xf32, #tpu.memory_space<vmem>>, %arg2: memref<9x128x128xf32, #tpu.memory_space<vmem>>, %arg3: memref<9x1x128xf32, #tpu.memory_space<vmem>>, %arg4: memref<8x16xf32, #tpu.memory_space<vmem>>) attributes {dimension_semantics = [#tpu.dimension_semantics<parallel>], iteration_bounds = array<i64: 2>, scalar_prefetch = 0 : i64, scratch_operands = 0 : i64, tpu.core_type = #tpu.core_type<tc>, window_params = [{transform_indices = @transform_0, window_bounds = array<i64: 8, 32>}, {pipeline_mode = #tpu.pipeline_mode<synchronous>, transform_indices = @transform_1, window_bounds = array<i64: 9, 128, 128>}, {pipeline_mode = #tpu.pipeline_mode<synchronous>, transform_indices = @transform_2, window_bounds = array<i64: 9, 1, 128>}, {transform_indices = @transform_3, window_bounds = array<i64: 8, 16>}]} {
    %c0 = arith.constant 0 : index
    %c0_0 = arith.constant 0 : index
    %0 = vector.load %arg1[%c0, %c0_0] : memref<8x32xf32, #tpu.memory_space<vmem>>, vector<8x32xf32>
    %c0_1 = arith.constant 0 : index
    %c0_2 = arith.constant 0 : index
    %c0_3 = arith.constant 0 : index
    %1 = vector.load %arg2[%c0_1, %c0_2, %c0_3] : memref<9x128x128xf32, #tpu.memory_space<vmem>>, vector<1x128x128xf32>
    %2 = vector.shape_cast %1 : vector<1x128x128xf32> to vector<128x128xf32>
    %3 = vector.extract_strided_slice %2 {offsets = [0, 0], sizes = [32, 128], strides = [1, 1]} : vector<128x128xf32> to vector<32x128xf32>
    %cst = arith.constant dense<0.000000e+00> : vector<8x128xf32>
    %4 = tpu.matmul %0, %3, %cst {dimension_numbers = #tpu.dot_dimension_numbers<[1], [0], [0], [1], [0, 0, 1, 1], [], []>} : vector<8x32xf32>, vector<32x128xf32>, vector<8x128xf32> -> vector<8x128xf32>
    %c0_4 = arith.constant 0 : index
    %c0_5 = arith.constant 0 : index
    %c0_6 = arith.constant 0 : index
    %5 = vector.load %arg3[%c0_4, %c0_5, %c0_6] : memref<9x1x128xf32, #tpu.memory_space<vmem>>, vector<1x1x128xf32>
    %6 = vector.shape_cast %5 : vector<1x1x128xf32> to vector<1x128xf32>
    %7 = vector.broadcast %6 : vector<1x128xf32> to vector<8x128xf32>
    %8 = arith.addf %4, %7 : vector<8x128xf32>
    %cst_7 = arith.constant 0.000000e+00 : f32
    %9 = vector.broadcast %cst_7 : f32 to vector<8x128xf32>
    %10 = arith.maximumf %8, %9 : vector<8x128xf32>
    %c1 = arith.constant 1 : index
    %c0_8 = arith.constant 0 : index
    %c0_9 = arith.constant 0 : index
    %11 = vector.load %arg2[%c1, %c0_8, %c0_9] : memref<9x128x128xf32, #tpu.memory_space<vmem>>, vector<1x128x128xf32>
    %12 = vector.shape_cast %11 : vector<1x128x128xf32> to vector<128x128xf32>
    %cst_10 = arith.constant dense<0.000000e+00> : vector<8x128xf32>
    %13 = tpu.matmul %10, %12, %cst_10 {dimension_numbers = #tpu.dot_dimension_numbers<[1], [0], [0], [1], [0, 0, 1, 1], [], []>} : vector<8x128xf32>, vector<128x128xf32>, vector<8x128xf32> -> vector<8x128xf32>
    %c1_11 = arith.constant 1 : index
    %c0_12 = arith.constant 0 : index
    %c0_13 = arith.constant 0 : index
    %14 = vector.load %arg3[%c1_11, %c0_12, %c0_13] : memref<9x1x128xf32, #tpu.memory_space<vmem>>, vector<1x1x128xf32>
    %15 = vector.shape_cast %14 : vector<1x1x128xf32> to vector<1x128xf32>
    %16 = vector.broadcast %15 : vector<1x128xf32> to vector<8x128xf32>
    %17 = arith.addf %13, %16 : vector<8x128xf32>
    %cst_14 = arith.constant 0.000000e+00 : f32
    %18 = vector.broadcast %cst_14 : f32 to vector<8x128xf32>
    %19 = arith.maximumf %17, %18 : vector<8x128xf32>
    %c2 = arith.constant 2 : index
    %c0_15 = arith.constant 0 : index
    %c0_16 = arith.constant 0 : index
    %20 = vector.load %arg2[%c2, %c0_15, %c0_16] : memref<9x128x128xf32, #tpu.memory_space<vmem>>, vector<1x128x128xf32>
    %21 = vector.shape_cast %20 : vector<1x128x128xf32> to vector<128x128xf32>
    %cst_17 = arith.constant dense<0.000000e+00> : vector<8x128xf32>
    %22 = tpu.matmul %19, %21, %cst_17 {dimension_numbers = #tpu.dot_dimension_numbers<[1], [0], [0], [1], [0, 0, 1, 1], [], []>} : vector<8x128xf32>, vector<128x128xf32>, vector<8x128xf32> -> vector<8x128xf32>
    %c2_18 = arith.constant 2 : index
    %c0_19 = arith.constant 0 : index
    %c0_20 = arith.constant 0 : index
    %23 = vector.load %arg3[%c2_18, %c0_19, %c0_20] : memref<9x1x128xf32, #tpu.memory_space<vmem>>, vector<1x1x128xf32>
    %24 = vector.shape_cast %23 : vector<1x1x128xf32> to vector<1x128xf32>
    %25 = vector.broadcast %24 : vector<1x128xf32> to vector<8x128xf32>
    %26 = arith.addf %22, %25 : vector<8x128xf32>
    %cst_21 = arith.constant 0.000000e+00 : f32
    %27 = vector.broadcast %cst_21 : f32 to vector<8x128xf32>
    %28 = arith.maximumf %26, %27 : vector<8x128xf32>
    %c3 = arith.constant 3 : index
    %c0_22 = arith.constant 0 : index
    %c0_23 = arith.constant 0 : index
    %29 = vector.load %arg2[%c3, %c0_22, %c0_23] : memref<9x128x128xf32, #tpu.memory_space<vmem>>, vector<1x128x128xf32>
    %30 = vector.shape_cast %29 : vector<1x128x128xf32> to vector<128x128xf32>
    %cst_24 = arith.constant dense<0.000000e+00> : vector<8x128xf32>
    %31 = tpu.matmul %28, %30, %cst_24 {dimension_numbers = #tpu.dot_dimension_numbers<[1], [0], [0], [1], [0, 0, 1, 1], [], []>} : vector<8x128xf32>, vector<128x128xf32>, vector<8x128xf32> -> vector<8x128xf32>
    %c3_25 = arith.constant 3 : index
    %c0_26 = arith.constant 0 : index
    %c0_27 = arith.constant 0 : index
    %32 = vector.load %arg3[%c3_25, %c0_26, %c0_27] : memref<9x1x128xf32, #tpu.memory_space<vmem>>, vector<1x1x128xf32>
    %33 = vector.shape_cast %32 : vector<1x1x128xf32> to vector<1x128xf32>
    %34 = vector.broadcast %33 : vector<1x128xf32> to vector<8x128xf32>
    %35 = arith.addf %31, %34 : vector<8x128xf32>
    %cst_28 = arith.constant 0.000000e+00 : f32
    %36 = vector.broadcast %cst_28 : f32 to vector<8x128xf32>
    %37 = arith.maximumf %35, %36 : vector<8x128xf32>
    %c4 = arith.constant 4 : index
    %c0_29 = arith.constant 0 : index
    %c0_30 = arith.constant 0 : index
    %38 = vector.load %arg2[%c4, %c0_29, %c0_30] : memref<9x128x128xf32, #tpu.memory_space<vmem>>, vector<1x128x128xf32>
    %39 = vector.shape_cast %38 : vector<1x128x128xf32> to vector<128x128xf32>
    %cst_31 = arith.constant dense<0.000000e+00> : vector<8x128xf32>
    %40 = tpu.matmul %37, %39, %cst_31 {dimension_numbers = #tpu.dot_dimension_numbers<[1], [0], [0], [1], [0, 0, 1, 1], [], []>} : vector<8x128xf32>, vector<128x128xf32>, vector<8x128xf32> -> vector<8x128xf32>
    %c4_32 = arith.constant 4 : index
    %c0_33 = arith.constant 0 : index
    %c0_34 = arith.constant 0 : index
    %41 = vector.load %arg3[%c4_32, %c0_33, %c0_34] : memref<9x1x128xf32, #tpu.memory_space<vmem>>, vector<1x1x128xf32>
    %42 = vector.shape_cast %41 : vector<1x1x128xf32> to vector<1x128xf32>
    %43 = vector.broadcast %42 : vector<1x128xf32> to vector<8x128xf32>
    %44 = arith.addf %40, %43 : vector<8x128xf32>
    %cst_35 = arith.constant 0.000000e+00 : f32
    %45 = vector.broadcast %cst_35 : f32 to vector<8x128xf32>
    %46 = arith.maximumf %44, %45 : vector<8x128xf32>
    %c5 = arith.constant 5 : index
    %c0_36 = arith.constant 0 : index
    %c0_37 = arith.constant 0 : index
    %47 = vector.load %arg2[%c5, %c0_36, %c0_37] : memref<9x128x128xf32, #tpu.memory_space<vmem>>, vector<1x128x128xf32>
    %48 = vector.shape_cast %47 : vector<1x128x128xf32> to vector<128x128xf32>
    %cst_38 = arith.constant dense<0.000000e+00> : vector<8x128xf32>
    %49 = tpu.matmul %46, %48, %cst_38 {dimension_numbers = #tpu.dot_dimension_numbers<[1], [0], [0], [1], [0, 0, 1, 1], [], []>} : vector<8x128xf32>, vector<128x128xf32>, vector<8x128xf32> -> vector<8x128xf32>
    %c5_39 = arith.constant 5 : index
    %c0_40 = arith.constant 0 : index
    %c0_41 = arith.constant 0 : index
    %50 = vector.load %arg3[%c5_39, %c0_40, %c0_41] : memref<9x1x128xf32, #tpu.memory_space<vmem>>, vector<1x1x128xf32>
    %51 = vector.shape_cast %50 : vector<1x1x128xf32> to vector<1x128xf32>
    %52 = vector.broadcast %51 : vector<1x128xf32> to vector<8x128xf32>
    %53 = arith.addf %49, %52 : vector<8x128xf32>
    %cst_42 = arith.constant 0.000000e+00 : f32
    %54 = vector.broadcast %cst_42 : f32 to vector<8x128xf32>
    %55 = arith.maximumf %53, %54 : vector<8x128xf32>
    %c6 = arith.constant 6 : index
    %c0_43 = arith.constant 0 : index
    %c0_44 = arith.constant 0 : index
    %56 = vector.load %arg2[%c6, %c0_43, %c0_44] : memref<9x128x128xf32, #tpu.memory_space<vmem>>, vector<1x128x128xf32>
    %57 = vector.shape_cast %56 : vector<1x128x128xf32> to vector<128x128xf32>
    %cst_45 = arith.constant dense<0.000000e+00> : vector<8x128xf32>
    %58 = tpu.matmul %55, %57, %cst_45 {dimension_numbers = #tpu.dot_dimension_numbers<[1], [0], [0], [1], [0, 0, 1, 1], [], []>} : vector<8x128xf32>, vector<128x128xf32>, vector<8x128xf32> -> vector<8x128xf32>
    %c6_46 = arith.constant 6 : index
    %c0_47 = arith.constant 0 : index
    %c0_48 = arith.constant 0 : index
    %59 = vector.load %arg3[%c6_46, %c0_47, %c0_48] : memref<9x1x128xf32, #tpu.memory_space<vmem>>, vector<1x1x128xf32>
    %60 = vector.shape_cast %59 : vector<1x1x128xf32> to vector<1x128xf32>
    %61 = vector.broadcast %60 : vector<1x128xf32> to vector<8x128xf32>
    %62 = arith.addf %58, %61 : vector<8x128xf32>
    %cst_49 = arith.constant 0.000000e+00 : f32
    %63 = vector.broadcast %cst_49 : f32 to vector<8x128xf32>
    %64 = arith.maximumf %62, %63 : vector<8x128xf32>
    %c7 = arith.constant 7 : index
    %c0_50 = arith.constant 0 : index
    %c0_51 = arith.constant 0 : index
    %65 = vector.load %arg2[%c7, %c0_50, %c0_51] : memref<9x128x128xf32, #tpu.memory_space<vmem>>, vector<1x128x128xf32>
    %66 = vector.shape_cast %65 : vector<1x128x128xf32> to vector<128x128xf32>
    %cst_52 = arith.constant dense<0.000000e+00> : vector<8x128xf32>
    %67 = tpu.matmul %64, %66, %cst_52 {dimension_numbers = #tpu.dot_dimension_numbers<[1], [0], [0], [1], [0, 0, 1, 1], [], []>} : vector<8x128xf32>, vector<128x128xf32>, vector<8x128xf32> -> vector<8x128xf32>
    %c7_53 = arith.constant 7 : index
    %c0_54 = arith.constant 0 : index
    %c0_55 = arith.constant 0 : index
    %68 = vector.load %arg3[%c7_53, %c0_54, %c0_55] : memref<9x1x128xf32, #tpu.memory_space<vmem>>, vector<1x1x128xf32>
    %69 = vector.shape_cast %68 : vector<1x1x128xf32> to vector<1x128xf32>
    %70 = vector.broadcast %69 : vector<1x128xf32> to vector<8x128xf32>
    %71 = arith.addf %67, %70 : vector<8x128xf32>
    %cst_56 = arith.constant 0.000000e+00 : f32
    %72 = vector.broadcast %cst_56 : f32 to vector<8x128xf32>
    %73 = arith.maximumf %71, %72 : vector<8x128xf32>
    %c8 = arith.constant 8 : index
    %c0_57 = arith.constant 0 : index
    %c0_58 = arith.constant 0 : index
    %74 = vector.load %arg2[%c8, %c0_57, %c0_58] : memref<9x128x128xf32, #tpu.memory_space<vmem>>, vector<1x128x128xf32>
    %75 = vector.shape_cast %74 : vector<1x128x128xf32> to vector<128x128xf32>
    %cst_59 = arith.constant dense<0.000000e+00> : vector<8x128xf32>
    %76 = tpu.matmul %73, %75, %cst_59 {dimension_numbers = #tpu.dot_dimension_numbers<[1], [0], [0], [1], [0, 0, 1, 1], [], []>} : vector<8x128xf32>, vector<128x128xf32>, vector<8x128xf32> -> vector<8x128xf32>
    %c8_60 = arith.constant 8 : index
    %c0_61 = arith.constant 0 : index
    %c0_62 = arith.constant 0 : index
    %77 = vector.load %arg3[%c8_60, %c0_61, %c0_62] : memref<9x1x128xf32, #tpu.memory_space<vmem>>, vector<1x1x128xf32>
    %78 = vector.shape_cast %77 : vector<1x1x128xf32> to vector<1x128xf32>
    %79 = vector.broadcast %78 : vector<1x128xf32> to vector<8x128xf32>
    %80 = arith.addf %76, %79 : vector<8x128xf32>
    %81 = vector.extract_strided_slice %80 {offsets = [0, 0], sizes = [8, 16], strides = [1, 1]} : vector<8x128xf32> to vector<8x16xf32>
    %c0_63 = arith.constant 0 : index
    %c0_64 = arith.constant 0 : index
    %82 = vector.load %arg4[%c0_63, %c0_64] : memref<8x16xf32, #tpu.memory_space<vmem>>, vector<8x16xf32>
    tpu.vector_store %arg4[%c0_63, %c0_64], %81 {strides = array<i32>} : memref<8x16xf32, #tpu.memory_space<vmem>>, vector<8x16xf32>,
    return
  }
  func.func @transform_0(%arg0: i32) -> (i32, i32) {
    %c0_i32 = arith.constant 0 : i32
    %c0_i32_0 = arith.constant 0 : i32
    return %arg0, %c0_i32 : i32, i32
  }
  func.func @transform_1(%arg0: i32) -> (i32, i32, i32) {
    %c0_i32 = arith.constant 0 : i32
    %c0_i32_0 = arith.constant 0 : i32
    %c0_i32_1 = arith.constant 0 : i32
    %c0_i32_2 = arith.constant 0 : i32
    return %c0_i32, %c0_i32_0, %c0_i32_1 : i32, i32, i32
  }
  func.func @transform_2(%arg0: i32) -> (i32, i32, i32) {
    %c0_i32 = arith.constant 0 : i32
    %c0_i32_0 = arith.constant 0 : i32
    %c0_i32_1 = arith.constant 0 : i32
    %c0_i32_2 = arith.constant 0 : i32
    return %c0_i32, %c0_i32_0, %c0_i32_1 : i32, i32, i32
  }
  func.func @transform_3(%arg0: i32) -> (i32, i32) {
    %c0_i32 = arith.constant 0 : i32
    %c0_i32_0 = arith.constant 0 : i32
    return %arg0, %c0_i32 : i32, i32
  }
}

</mosaic_0001>

<llo_original>
// kernel: tpu_custom_call.1
$region0: #{tpu_custom_call.1}
  #allocation0 [shape = 'u32[]', space=smem, size = 0x4, offset = 0x4, fixed_abs, tag = 'smem constant byte address 0x4 - core index']
  #allocation1 [shape = 'u32[144,128]{1,0:T(1,128)}', space=vmem, size = 0x12000, scoped, tag = 'internal scratch']
  %s0 = inlined_call_operand.hbm [shape: f32[16,32], index: 0, kind: input, shape index: {}]
  %s1 = inlined_call_operand.hbm [shape: f32[9,128,128], index: 1, kind: input, shape index: {}]
  %s2 = inlined_call_operand.hbm [shape: f32[9,1,128], index: 2, kind: input, shape index: {}]
  %s3 = inlined_call_operand.hbm [shape: f32[16,16], index: 3, kind: output, shape index: {}]
  %s4 = sld [smem:[#allocation0]]
  $region57: #{tpu_custom_call.1} parent=0
    _
  %s6 = ssub.s32 1, %s4
  %s7 = scalar_select 0, %s6, %s4
  $region1: #{tpu_custom_call.1} parent=0
    #allocation2 [shape = 'u8[8192]{0}', space=vmem, size = 0x2000, scoped, tag = 'input window, operand 0']
    #allocation3 [shape = 's32[2]{0}', space=sflag, size = 0x8, scoped, tag = 'scoped memory for tpu_custom_call.1']
    #allocation4 [shape = 's32[2]{0}', space=sflag, size = 0x8, scoped, tag = 'scoped memory for tpu_custom_call.1']
    #allocation5 [shape = 'u8[589824]{0}', space=vmem, size = 0x90000, scoped, tag = 'input window, operand 1, single buffered']
    #allocation6 [shape = 's32[1]{0}', space=sflag, size = 0x4, scoped, tag = 'scoped memory for tpu_custom_call.1']
    #allocation7 [shape = 'u8[4608]{0}', space=vmem, size = 0x1400, scoped, tag = 'input window, operand 2, single buffered']
    #allocation8 [shape = 'u8[8192]{0}', space=vmem, size = 0x2000, scoped, tag = 'output window, operand 0']
    %8 = vsyncpa [#allocation3], 0
    %s9 = scalar_lea.sflag [#allocation3], 1
    %10 = vsyncpa %s9, 0
    %11 = vsyncpa [#allocation6], 0
    %12 = vsyncpa [#allocation4], 0
    %s13 = scalar_lea.sflag [#allocation4], 1
    %14 = vsyncpa %s13, 0
    loop: start=0, step=1, limit=4
    $region2: #{tpu_custom_call.1} parent=1 // loop_pre_header
      _
    $region3: #{tpu_custom_call.1} parent=1 // loop_header
      %s16 = sphi 0, %s20
      %p17 = scmp.ge.s32.totalorder %s16, 4
      %s26 = sphi 0, %s28
      %s29 = sphi 0, %s26
      %s30 = sphi 0, %s29
      %s46 = sphi 0, %s30
      %s50 = sphi 0, %s50
      %s52 = sphi 0, %s50
      %s53 = sphi 0, %s52
      %s67 = sphi 0, %s53
      %s71 = sphi 0, %s71
      %s73 = sphi 0, %s71
      %s74 = sphi 0, %s73
      %s88 = sphi 0, %s74
      %s94 = sphi 0, %s96
      %s97 = sphi 0, %s94
      %s98 = sphi 0, %s97
      %s114 = sphi 0, %s98
    $region4: #{tpu_custom_call.1} parent=1 // loop_header_branch
      %19 = sbr.rel (%p17) target = $region8
    $region5: #{tpu_custom_call.1} parent=1 // loop_body
      %s21 = ssub.s32 %s16, 1
      %s22 = ssub.s32 %s16, 2
      %s23 = sadd.s32 %s16, 1
      %s24 = ssub.s32 %s16, %s23
      %p25 = scmp.eq.s32.totalorder %s24, 0
      %s27 = sadd.s32 %s26, 1
      %s28 = scalar_select %p25, %s26, %s27
      %p31 = pneg %p25
      %p32 = scmp.eq.s32.totalorder %s16, 1
      %p33 = por %p31, %p32
      %p34 = scmp.ne.s32.totalorder %s26, %s29
      %p35 = scmp.eq.s32.totalorder %s16, 0
      %p36 = por %p34, %p35
      %p37 = scmp.ne.s32.totalorder %s26, %s29
      %p38 = scmp.eq.s32.totalorder %s21, 1
      %p39 = por %p37, %p38
      %p40 = scmp.ne.s32.totalorder %s29, %s30
      %p41 = scmp.eq.s32.totalorder %s21, 0
      %p42 = por %p40, %p41
      %p43 = scmp.ne.s32.totalorder %s29, %s30
      %p44 = scmp.eq.s32.totalorder %s22, 1
      %p45 = por %p43, %p44
      %p47 = scmp.ne.s32.totalorder %s30, %s46
      %p48 = scmp.eq.s32.totalorder %s22, 0
      %p49 = por %p47, %p48
      %s51 = sadd.s32 %s50, 1
      %p54 = scmp.eq.s32.totalorder %s16, 1
      %p55 = scmp.ne.s32.totalorder %s50, %s52
      %p56 = scmp.eq.s32.totalorder %s16, 0
      %p57 = por %p55, %p56
      %p58 = scmp.ne.s32.totalorder %s50, %s52
      %p59 = scmp.eq.s32.totalorder %s21, 1
      %p60 = por %p58, %p59
      %p61 = scmp.ne.s32.totalorder %s52, %s53
      %p62 = scmp.eq.s32.totalorder %s21, 0
      %p63 = por %p61, %p62
      %p64 = scmp.ne.s32.totalorder %s52, %s53
      %p65 = scmp.eq.s32.totalorder %s22, 1
      %p66 = por %p64, %p65
      %p68 = scmp.ne.s32.totalorder %s53, %s67
      %p69 = scmp.eq.s32.totalorder %s22, 0
      %p70 = por %p68, %p69
      %s72 = sadd.s32 %s71, 1
      %p75 = scmp.eq.s32.totalorder %s16, 1
      %p76 = scmp.ne.s32.totalorder %s71, %s73
      %p77 = scmp.eq.s32.totalorder %s16, 0
      %p78 = por %p76, %p77
      %p79 = scmp.ne.s32.totalorder %s71, %s73
      %p80 = scmp.eq.s32.totalorder %s21, 1
      %p81 = por %p79, %p80
      %p82 = scmp.ne.s32.totalorder %s73, %s74
      %p83 = scmp.eq.s32.totalorder %s21, 0
      %p84 = por %p82, %p83
      %p85 = scmp.ne.s32.totalorder %s73, %s74
      %p86 = scmp.eq.s32.totalorder %s22, 1
      %p87 = por %p85, %p86
      %p89 = scmp.ne.s32.totalorder %s74, %s88
      %p90 = scmp.eq.s32.totalorder %s22, 0
      %p91 = por %p89, %p90
      %s92 = ssub.s32 %s16, %s23
      %p93 = scmp.eq.s32.totalorder %s92, 0
      %s95 = sadd.s32 %s94, 1
      %s96 = scalar_select %p93, %s94, %s95
      %p99 = pneg %p93
      %p100 = scmp.eq.s32.totalorder %s16, 1
      %p101 = por %p99, %p100
      %p102 = scmp.ne.s32.totalorder %s94, %s97
      %p103 = scmp.eq.s32.totalorder %s16, 0
      %p104 = por %p102, %p103
      %p105 = scmp.ne.s32.totalorder %s94, %s97
      %p106 = scmp.eq.s32.totalorder %s21, 1
      %p107 = por %p105, %p106
      %p108 = scmp.ne.s32.totalorder %s97, %s98
      %p109 = scmp.eq.s32.totalorder %s21, 0
      %p110 = por %p108, %p109
      %p111 = scmp.ne.s32.totalorder %s97, %s98
      %p112 = scmp.eq.s32.totalorder %s22, 1
      %p113 = por %p111, %p112
      %p115 = scmp.ne.s32.totalorder %s98, %s114
      %p116 = scmp.eq.s32.totalorder %s22, 0
      %p117 = por %p115, %p116
      %p118 = scmp.le.s32.totalorder 1, %s16
      %p119 = scmp.lt.s32.totalorder %s16, 3
      %p120 = pnand %p118, %p119
      %p121 = pneg %p120
      // Predicated region
      $region9: #{tpu_custom_call.1} parent=5 // pred_check
        _
      $region10: #{tpu_custom_call.1} parent=5 // pred_check_branch
        %123 = sbr.rel (%p120) target = $region12
      $region11: #{tpu_custom_call.1} parent=5 // pred_region
        %s124 = ssub.s32 %s16, 1
        // Predicated region
        $region13: #{tpu_custom_call.1} parent=11 // pred_check
          %p125 = pneg %p63
        $region14: #{tpu_custom_call.1} parent=11 // pred_check_branch
          %127 = sbr.rel (%p125) target = $region16
        $region15: #{tpu_custom_call.1} parent=11 // pred_region
          %s129 = ssub.s32 18432, 18432
          %130 = vsyncadd [#allocation6], %s129
          %s131 = sshll.u32 [#allocation5], 4
          %s132 = int_to_ptr.vmem [resolvable:$true] %s131
          %137 = dma.hbm_to_vmem [thread:$0]  %s1, 18432, %s132, [#allocation6], 128, 128, 8
        $region16: #{tpu_custom_call.1} parent=11 // pred_fallthru
          _
        // Predicated region
        $region17: #{tpu_custom_call.1} parent=11 // pred_check
          %p138 = pneg %p84
        $region18: #{tpu_custom_call.1} parent=11 // pred_check_branch
          %140 = sbr.rel (%p138) target = $region20
        $region19: #{tpu_custom_call.1} parent=11 // pred_region
          %s142 = ssub.s32 144, 144
          %143 = vsyncadd [#allocation6], %s142
          %s144 = sshll.u32 [#allocation7], 4
          %s145 = int_to_ptr.vmem [resolvable:$true] %s144
          %150 = dma.hbm_to_vmem [thread:$0]  %s2, 144, %s145, [#allocation6], 16, 16, 1
        $region20: #{tpu_custom_call.1} parent=11 // pred_fallthru
          _
      $region12: #{tpu_custom_call.1} parent=5 // pred_fallthru
        _
      %p151 = scmp.lt.s32.totalorder %s16, 2
      // Predicated region
      $region21: #{tpu_custom_call.1} parent=5 // pred_check
        %p152 = pneg %p151
      $region22: #{tpu_custom_call.1} parent=5 // pred_check_branch
        %154 = sbr.rel (%p152) target = $region24
      $region23: #{tpu_custom_call.1} parent=5 // pred_region
        // Predicated region
        $region25: #{tpu_custom_call.1} parent=23 // pred_check
          %p155 = pneg %p36
        $region26: #{tpu_custom_call.1} parent=23 // pred_check_branch
          %157 = sbr.rel (%p155) target = $region28
        $region27: #{tpu_custom_call.1} parent=23 // pred_region
          %s158 = sand.u32 %s26, 1
          %s159 = scalar_lea.sflag [#allocation3], %s158
          %s160 = sand.u32 %s26, 1
          %s161 = smul.addr %s160, 8
          %s162 = scalar_lea.vmem [#allocation2], %s161
          %s164 = ssub.s32 128, 128
          %165 = vsyncadd %s159, %s164
          %s166 = smul.addr %s16, 128
          %s167 = scalar_lea.hbm %s0, %s166
          %s169 = sshll.u32 %s162, 4
          %s170 = int_to_ptr.vmem [resolvable:$true] %s169
          %172 = dma.hbm_to_vmem [thread:$0]  %s167, 128, %s170, %s159
        $region28: #{tpu_custom_call.1} parent=23 // pred_fallthru
          _
      $region24: #{tpu_custom_call.1} parent=5 // pred_fallthru
        _
      %p173 = scmp.le.s32.totalorder 1, %s16
      %p174 = scmp.lt.s32.totalorder %s16, 3
      %p175 = pnand %p173, %p174
      %p176 = pneg %p175
      // Predicated region
      $region29: #{tpu_custom_call.1} parent=5 // pred_check
        _
      $region30: #{tpu_custom_call.1} parent=5 // pred_check_branch
        %178 = sbr.rel (%p175) target = $region32
      $region31: #{tpu_custom_call.1} parent=5 // pred_region
        %s179 = ssub.s32 %s16, 1
        %s180 = sand.u32 %s29, 1
        %s181 = scalar_lea.sflag [#allocation3], %s180
        %s182 = sand.u32 %s29, 1
        %s183 = smul.addr %s182, 8
        %s184 = scalar_lea.vmem [#allocation2], %s183
        // Predicated region
        $region33: #{tpu_custom_call.1} parent=31 // pred_check
          %p185 = pneg %p42
        $region34: #{tpu_custom_call.1} parent=31 // pred_check_branch
          %187 = sbr.rel (%p185) target = $region36
        $region35: #{tpu_custom_call.1} parent=31 // pred_region
          %188 = dma.done %s181, 128
        $region36: #{tpu_custom_call.1} parent=31 // pred_fallthru
          _
        // Predicated region
        $region37: #{tpu_custom_call.1} parent=31 // pred_check
          %p189 = pneg %p63
        $region38: #{tpu_custom_call.1} parent=31 // pred_check_branch
          %191 = sbr.rel (%p189) target = $region40
        $region39: #{tpu_custom_call.1} parent=31 // pred_region
          %192 = dma.done [#allocation6], 18432
        $region40: #{tpu_custom_call.1} parent=31 // pred_fallthru
          _
        // Predicated region
        $region41: #{tpu_custom_call.1} parent=31 // pred_check
          %p193 = pneg %p84
        $region42: #{tpu_custom_call.1} parent=31 // pred_check_branch
          %195 = sbr.rel (%p193) target = $region44
        $region43: #{tpu_custom_call.1} parent=31 // pred_region
          %196 = dma.done [#allocation6], 144
        $region44: #{tpu_custom_call.1} parent=31 // pred_fallthru
          _
        %s197 = sand.u32 %s29, 1
        %s198 = scalar_lea.sflag [#allocation3], %s197
        %s199 = sand.u32 %s29, 1
        %s200 = smul.addr %s199, 8
        %s201 = scalar_lea.vmem [#allocation2], %s200
        %p202 = pneg %p42
        %p203 = pneg %p39
        %p204 = pneg %p63
        %p205 = pneg %p60
        %p206 = pneg %p84
        %p207 = pneg %p81
        %p208 = pneg %p110
        %p209 = pneg %p107
        %s210 = sand.u32 %s97, 1
        %s211 = scalar_lea.sflag [#allocation4], %s210
        %s212 = sand.u32 %s97, 1
        %s213 = smul.addr %s212, 8
        %s214 = scalar_lea.vmem [#allocation8], %s213
        %v215 = vld [vmem:[%s184] sm:$0xff]
        %v216 = vld [vmem:[#allocation5] sm:$0xff]
        %v217 = vld [vmem:[#allocation5 + $0x8] sm:$0xff]
        %v218 = vld [vmem:[#allocation5 + $0x10] sm:$0xff]
        %v219 = vld [vmem:[#allocation5 + $0x18] sm:$0xff]
        %v220 = vld [vmem:[#allocation7] sm:$0x1]
        %v222 = vlaneseq
        %v223 = vshrl.u32 %v222, 7
        %v224 = vsub.s32 0, %v223
        %v225 = vrot.slane %v220, %v224
        %vm227 = vcmask 261120
        %v229 = vsel %vm227, %v215, 0
        %231 = vmatprep.subr.mxu0 0.0
        %232 = vmatpush1.msra.mxu0 %v216
        %233 = vmatprep.subr.mxu0 0.0
        %234 = vmatpush1.msra.mxu0 %v217
        %235 = vmatprep.subr.mxu0 0.0
        %236 = vmatpush1.msra.mxu0 %v218
        %237 = vmatprep.subr.mxu0 0.0
        %238 = vmatpush1.msra.mxu0 %v219
        %239 = vmatprep.subr.mxu0 0.0
        %240 = vmatpush1.msra.mxu0 0.0
        %241 = vmatprep.subr.mxu0 0.0
        %242 = vmatpush1.msra.mxu0 0.0
        %243 = vmatprep.subr.mxu0 0.0
        %244 = vmatpush1.msra.mxu0 0.0
        %245 = vmatprep.subr.mxu0 0.0
        %246 = vmatpush1.msra.mxu0 0.0
        %247 = vmatprep.subr.mxu0 0.0
        %248 = vmatpush1.msra.mxu0 0.0
        %249 = vmatprep.subr.mxu0 0.0
        %250 = vmatpush1.msra.mxu0 0.0
        %251 = vmatprep.subr.mxu0 0.0
        %252 = vmatpush1.msra.mxu0 0.0
        %253 = vmatprep.subr.mxu0 0.0
        %254 = vmatpush1.msra.mxu0 0.0
        %255 = vmatprep.subr.mxu0 0.0
        %256 = vmatpush1.msra.mxu0 0.0
        %257 = vmatprep.subr.mxu0 0.0
        %258 = vmatpush1.msra.mxu0 0.0
        %259 = vmatprep.subr.mxu0 0.0
        %260 = vmatpush1.msra.mxu0 0.0
        %261 = vmatprep.subr.mxu0 0.0
        %262 = vmatpush1.msra.mxu0 0.0
        %263 = vmatprep.subr.mxu0 0.0
        %264 = vmatpush1.msra.mxu0 0.0
        %265 = vmatprep.subr.mxu0 0.0
        %266 = vmatpush1.msra.mxu0 0.0
        %267 = vmatprep.subr.mxu0 0.0
        %268 = vmatpush1.msra.mxu0 0.0
        %269 = vmatprep.subr.mxu0 0.0
        %270 = vmatpush1.msra.mxu0 0.0
        %271 = vmatprep.subr.mxu0 0.0
        %272 = vmatpush1.msra.mxu0 0.0
        %273 = vmatprep.subr.mxu0 0.0
        %274 = vmatpush1.msra.mxu0 0.0
        %275 = vmatprep.subr.mxu0 0.0
        %276 = vmatpush1.msra.mxu0 0.0
        %277 = vmatprep.subr.mxu0 0.0
        %278 = vmatpush1.msra.mxu0 0.0
        %279 = vmatprep.subr.mxu0 0.0
        %280 = vmatpush1.msra.mxu0 0.0
        %281 = vmatprep.subr.mxu0 0.0
        %282 = vmatpush1.msra.mxu0 0.0
        %283 = vmatprep.subr.mxu0 0.0
        %284 = vmatpush1.msra.mxu0 0.0
        %285 = vmatprep.subr.mxu0 0.0
        %286 = vmatpush1.msra.mxu0 0.0
        %287 = vmatprep.subr.mxu0 0.0
        %288 = vmatpush1.msra.mxu0 0.0
        %289 = vmatprep.subr.mxu0 0.0
        %290 = vmatpush1.msra.mxu0 0.0
        %291 = vmatprep.subr.mxu0 0.0
        %292 = vmatpush1.msra.mxu0 0.0
        %293 = vmatprep.subr.mxu0 0.0
        %294 = vmatpush1.msra.mxu0 0.0
        %295 = vmatprep.mubr.f32.mxu0 0.0
        %296 = vmatmul.mubr.f32.gmra.mrb[0].mxu0 %v229
        %v297 = vpop.f32.mrb[0].mxu0
        %v298 = vadd.f32 %v225, %v297
        %v299 = vpop.f32.mrb[0].mxu0
        %300 = vdwg.mxu0
        %v301 = vmax.f32 %v298, 0.0
        %s302 = scalar_lea.vmem [#allocation5], 128
        %v303 = vld [vmem:[%s302] sm:$0xff]
        %v304 = vld [vmem:[%s302 + $0x8] sm:$0xff]
        %v305 = vld [vmem:[%s302 + $0x10] sm:$0xff]
        %v306 = vld [vmem:[%s302 + $0x18] sm:$0xff]
        %v307 = vld [vmem:[%s302 + $0x20] sm:$0xff]
        %v308 = vld [vmem:[%s302 + $0x28] sm:$0xff]
        %v309 = vld [vmem:[%s302 + $0x30] sm:$0xff]
        %v310 = vld [vmem:[%s302 + $0x38] sm:$0xff]
        %v311 = vld [vmem:[%s302 + $0x40] sm:$0xff]
        %v312 = vld [vmem:[%s302 + $0x48] sm:$0xff]
        %v313 = vld [vmem:[%s302 + $0x50] sm:$0xff]
        %v314 = vld [vmem:[%s302 + $0x58] sm:$0xff]
        %v315 = vld [vmem:[%s302 + $0x60] sm:$0xff]
        %v316 = vld [vmem:[%s302 + $0x68] sm:$0xff]
        %v317 = vld [vmem:[%s302 + $0x70] sm:$0xff]
        %v318 = vld [vmem:[%s302 + $0x78] sm:$0xff]
        %s319 = scalar_lea.vmem [#allocation7], 1
        %v320 = vld [vmem:[%s319] sm:$0x1]
        %v322 = vlaneseq
        %v323 = vshrl.u32 %v322, 7
        %v324 = vsub.s32 0, %v323
        %v325 = vrot.slane %v320, %v324
        %327 = vmatprep.subr.mxu0 0.0
        %328 = vmatpush1.msra.mxu0 %v303
        %329 = vmatprep.subr.mxu0 0.0
        %330 = vmatpush1.msra.mxu0 %v304
        %331 = vmatprep.subr.mxu0 0.0
        %332 = vmatpush1.msra.mxu0 %v305
        %333 = vmatprep.subr.mxu0 0.0
        %334 = vmatpush1.msra.mxu0 %v306
        %335 = vmatprep.subr.mxu0 0.0
        %336 = vmatpush1.msra.mxu0 %v307
        %337 = vmatprep.subr.mxu0 0.0
        %338 = vmatpush1.msra.mxu0 %v308
        %339 = vmatprep.subr.mxu0 0.0
        %340 = vmatpush1.msra.mxu0 %v309
        %341 = vmatprep.subr.mxu0 0.0
        %342 = vmatpush1.msra.mxu0 %v310
        %343 = vmatprep.subr.mxu0 0.0
        %344 = vmatpush1.msra.mxu0 %v311
        %345 = vmatprep.subr.mxu0 0.0
        %346 = vmatpush1.msra.mxu0 %v312
        %347 = vmatprep.subr.mxu0 0.0
        %348 = vmatpush1.msra.mxu0 %v313
        %349 = vmatprep.subr.mxu0 0.0
        %350 = vmatpush1.msra.mxu0 %v314
        %351 = vmatprep.subr.mxu0 0.0
        %352 = vmatpush1.msra.mxu0 %v315
        %353 = vmatprep.subr.mxu0 0.0
        %354 = vmatpush1.msra.mxu0 %v316
        %355 = vmatprep.subr.mxu0 0.0
        %356 = vmatpush1.msra.mxu0 %v317
        %357 = vmatprep.subr.mxu0 0.0
        %358 = vmatpush1.msra.mxu0 %v318
        %359 = vmatprep.subr.mxu0 0.0
        %360 = vmatpush1.msra.mxu0 0.0
        %361 = vmatprep.subr.mxu0 0.0
        %362 = vmatpush1.msra.mxu0 0.0
        %363 = vmatprep.subr.mxu0 0.0
        %364 = vmatpush1.msra.mxu0 0.0
        %365 = vmatprep.subr.mxu0 0.0
        %366 = vmatpush1.msra.mxu0 0.0
        %367 = vmatprep.subr.mxu0 0.0
        %368 = vmatpush1.msra.mxu0 0.0
        %369 = vmatprep.subr.mxu0 0.0
        %370 = vmatpush1.msra.mxu0 0.0
        %371 = vmatprep.subr.mxu0 0.0
        %372 = vmatpush1.msra.mxu0 0.0
        %373 = vmatprep.subr.mxu0 0.0
        %374 = vmatpush1.msra.mxu0 0.0
        %375 = vmatprep.subr.mxu0 0.0
        %376 = vmatpush1.msra.mxu0 0.0
        %377 = vmatprep.subr.mxu0 0.0
        %378 = vmatpush1.msra.mxu0 0.0
        %379 = vmatprep.subr.mxu0 0.0
        %380 = vmatpush1.msra.mxu0 0.0
        %381 = vmatprep.subr.mxu0 0.0
        %382 = vmatpush1.msra.mxu0 0.0
        %383 = vmatprep.subr.mxu0 0.0
        %384 = vmatpush1.msra.mxu0 0.0
        %385 = vmatprep.subr.mxu0 0.0
        %386 = vmatpush1.msra.mxu0 0.0
        %387 = vmatprep.subr.mxu0 0.0
        %388 = vmatpush1.msra.mxu0 0.0
        %389 = vmatprep.subr.mxu0 0.0
        %390 = vmatpush1.msra.mxu0 0.0
        %391 = vmatprep.mubr.f32.mxu0 0.0
        %392 = vmatmul.mubr.f32.gmra.mrb[0].mxu0 %v301
        %v393 = vpop.f32.mrb[0].mxu0
        %v394 = vadd.f32 %v325, %v393
        %v395 = vpop.f32.mrb[0].mxu0
        %396 = vdwg.mxu0
        %v397 = vmax.f32 %v394, 0.0
        %s398 = scalar_lea.vmem [#allocation5], 256
        %v399 = vld [vmem:[%s398] sm:$0xff]
        %v400 = vld [vmem:[%s398 + $0x8] sm:$0xff]
        %v401 = vld [vmem:[%s398 + $0x10] sm:$0xff]
        %v402 = vld [vmem:[%s398 + $0x18] sm:$0xff]
        %v403 = vld [vmem:[%s398 + $0x20] sm:$0xff]
        %v404 = vld [vmem:[%s398 + $0x28] sm:$0xff]
        %v405 = vld [vmem:[%s398 + $0x30] sm:$0xff]
        %v406 = vld [vmem:[%s398 + $0x38] sm:$0xff]
        %v407 = vld [vmem:[%s398 + $0x40] sm:$0xff]
        %v408 = vld [vmem:[%s398 + $0x48] sm:$0xff]
        %v409 = vld [vmem:[%s398 + $0x50] sm:$0xff]
        %v410 = vld [vmem:[%s398 + $0x58] sm:$0xff]
        %v411 = vld [vmem:[%s398 + $0x60] sm:$0xff]
        %v412 = vld [vmem:[%s398 + $0x68] sm:$0xff]
        %v413 = vld [vmem:[%s398 + $0x70] sm:$0xff]
        %v414 = vld [vmem:[%s398 + $0x78] sm:$0xff]
        %s415 = scalar_lea.vmem [#allocation7], 2
        %v416 = vld [vmem:[%s415] sm:$0x1]
        %v418 = vlaneseq
        %v419 = vshrl.u32 %v418, 7
        %v420 = vsub.s32 0, %v419
        %v421 = vrot.slane %v416, %v420
        %423 = vmatprep.subr.mxu0 0.0
        %424 = vmatpush1.msra.mxu0 %v399
        %425 = vmatprep.subr.mxu0 0.0
        %426 = vmatpush1.msra.mxu0 %v400
        %427 = vmatprep.subr.mxu0 0.0
        %428 = vmatpush1.msra.mxu0 %v401
        %429 = vmatprep.subr.mxu0 0.0
        %430 = vmatpush1.msra.mxu0 %v402
        %431 = vmatprep.subr.mxu0 0.0
        %432 = vmatpush1.msra.mxu0 %v403
        %433 = vmatprep.subr.mxu0 0.0
        %434 = vmatpush1.msra.mxu0 %v404
        %435 = vmatprep.subr.mxu0 0.0
        %436 = vmatpush1.msra.mxu0 %v405
        %437 = vmatprep.subr.mxu0 0.0
        %438 = vmatpush1.msra.mxu0 %v406
        %439 = vmatprep.subr.mxu0 0.0
        %440 = vmatpush1.msra.mxu0 %v407
        %441 = vmatprep.subr.mxu0 0.0
        %442 = vmatpush1.msra.mxu0 %v408
        %443 = vmatprep.subr.mxu0 0.0
        %444 = vmatpush1.msra.mxu0 %v409
        %445 = vmatprep.subr.mxu0 0.0
        %446 = vmatpush1.msra.mxu0 %v410
        %447 = vmatprep.subr.mxu0 0.0
        %448 = vmatpush1.msra.mxu0 %v411
        %449 = vmatprep.subr.mxu0 0.0
        %450 = vmatpush1.msra.mxu0 %v412
        %451 = vmatprep.subr.mxu0 0.0
        %452 = vmatpush1.msra.mxu0 %v413
        %453 = vmatprep.subr.mxu0 0.0
        %454 = vmatpush1.msra.mxu0 %v414
        %455 = vmatprep.subr.mxu0 0.0
        %456 = vmatpush1.msra.mxu0 0.0
        %457 = vmatprep.subr.mxu0 0.0
        %458 = vmatpush1.msra.mxu0 0.0
        %459 = vmatprep.subr.mxu0 0.0
        %460 = vmatpush1.msra.mxu0 0.0
        %461 = vmatprep.subr.mxu0 0.0
        %462 = vmatpush1.msra.mxu0 0.0
        %463 = vmatprep.subr.mxu0 0.0
        %464 = vmatpush1.msra.mxu0 0.0
        %465 = vmatprep.subr.mxu0 0.0
        %466 = vmatpush1.msra.mxu0 0.0
        %467 = vmatprep.subr.mxu0 0.0
        %468 = vmatpush1.msra.mxu0 0.0
        %469 = vmatprep.subr.mxu0 0.0
        %470 = vmatpush1.msra.mxu0 0.0
        %471 = vmatprep.subr.mxu0 0.0
        %472 = vmatpush1.msra.mxu0 0.0
        %473 = vmatprep.subr.mxu0 0.0
        %474 = vmatpush1.msra.mxu0 0.0
        %475 = vmatprep.subr.mxu0 0.0
        %476 = vmatpush1.msra.mxu0 0.0
        %477 = vmatprep.subr.mxu0 0.0
        %478 = vmatpush1.msra.mxu0 0.0
        %479 = vmatprep.subr.mxu0 0.0
        %480 = vmatpush1.msra.mxu0 0.0
        %481 = vmatprep.subr.mxu0 0.0
        %482 = vmatpush1.msra.mxu0 0.0
        %483 = vmatprep.subr.mxu0 0.0
        %484 = vmatpush1.msra.mxu0 0.0
        %485 = vmatprep.subr.mxu0 0.0
        %486 = vmatpush1.msra.mxu0 0.0
        %487 = vmatprep.mubr.f32.mxu0 0.0
        %488 = vmatmul.mubr.f32.gmra.mrb[0].mxu0 %v397
        %v489 = vpop.f32.mrb[0].mxu0
        %v490 = vadd.f32 %v421, %v489
        %v491 = vpop.f32.mrb[0].mxu0
        %492 = vdwg.mxu0
        %v493 = vmax.f32 %v490, 0.0
        %s494 = scalar_lea.vmem [#allocation5], 384
        %v495 = vld [vmem:[%s494] sm:$0xff]
        %v496 = vld [vmem:[%s494 + $0x8] sm:$0xff]
        %v497 = vld [vmem:[%s494 + $0x10] sm:$0xff]
        %v498 = vld [vmem:[%s494 + $0x18] sm:$0xff]
        %v499 = vld [vmem:[%s494 + $0x20] sm:$0xff]
        %v500 = vld [vmem:[%s494 + $0x28] sm:$0xff]
        %v501 = vld [vmem:[%s494 + $0x30] sm:$0xff]
        %v502 = vld [vmem:[%s494 + $0x38] sm:$0xff]
        %v503 = vld [vmem:[%s494 + $0x40] sm:$0xff]
        %v504 = vld [vmem:[%s494 + $0x48] sm:$0xff]
        %v505 = vld [vmem:[%s494 + $0x50] sm:$0xff]
        %v506 = vld [vmem:[%s494 + $0x58] sm:$0xff]
        %v507 = vld [vmem:[%s494 + $0x60] sm:$0xff]
        %v508 = vld [vmem:[%s494 + $0x68] sm:$0xff]
        %v509 = vld [vmem:[%s494 + $0x70] sm:$0xff]
        %v510 = vld [vmem:[%s494 + $0x78] sm:$0xff]
        %s511 = scalar_lea.vmem [#allocation7], 3
        %v512 = vld [vmem:[%s511] sm:$0x1]
        %v514 = vlaneseq
        %v515 = vshrl.u32 %v514, 7
        %v516 = vsub.s32 0, %v515
        %v517 = vrot.slane %v512, %v516
        %519 = vmatprep.subr.mxu0 0.0
        %520 = vmatpush1.msra.mxu0 %v495
        %521 = vmatprep.subr.mxu0 0.0
        %522 = vmatpush1.msra.mxu0 %v496
        %523 = vmatprep.subr.mxu0 0.0
        %524 = vmatpush1.msra.mxu0 %v497
        %525 = vmatprep.subr.mxu0 0.0
        %526 = vmatpush1.msra.mxu0 %v498
        %527 = vmatprep.subr.mxu0 0.0
        %528 = vmatpush1.msra.mxu0 %v499
        %529 = vmatprep.subr.mxu0 0.0
        %530 = vmatpush1.msra.mxu0 %v500
        %531 = vmatprep.subr.mxu0 0.0
        %532 = vmatpush1.msra.mxu0 %v501
        %533 = vmatprep.subr.mxu0 0.0
        %534 = vmatpush1.msra.mxu0 %v502
        %535 = vmatprep.subr.mxu0 0.0
        %536 = vmatpush1.msra.mxu0 %v503
        %537 = vmatprep.subr.mxu0 0.0
        %538 = vmatpush1.msra.mxu0 %v504
        %539 = vmatprep.subr.mxu0 0.0
        %540 = vmatpush1.msra.mxu0 %v505
        %541 = vmatprep.subr.mxu0 0.0
        %542 = vmatpush1.msra.mxu0 %v506
        %543 = vmatprep.subr.mxu0 0.0
        %544 = vmatpush1.msra.mxu0 %v507
        %545 = vmatprep.subr.mxu0 0.0
        %546 = vmatpush1.msra.mxu0 %v508
        %547 = vmatprep.subr.mxu0 0.0
        %548 = vmatpush1.msra.mxu0 %v509
        %549 = vmatprep.subr.mxu0 0.0
        %550 = vmatpush1.msra.mxu0 %v510
        %551 = vmatprep.subr.mxu0 0.0
        %552 = vmatpush1.msra.mxu0 0.0
        %553 = vmatprep.subr.mxu0 0.0
        %554 = vmatpush1.msra.mxu0 0.0
        %555 = vmatprep.subr.mxu0 0.0
        %556 = vmatpush1.msra.mxu0 0.0
        %557 = vmatprep.subr.mxu0 0.0
        %558 = vmatpush1.msra.mxu0 0.0
        %559 = vmatprep.subr.mxu0 0.0
        %560 = vmatpush1.msra.mxu0 0.0
        %561 = vmatprep.subr.mxu0 0.0
        %562 = vmatpush1.msra.mxu0 0.0
        %563 = vmatprep.subr.mxu0 0.0
        %564 = vmatpush1.msra.mxu0 0.0
        %565 = vmatprep.subr.mxu0 0.0
        %566 = vmatpush1.msra.mxu0 0.0
        %567 = vmatprep.subr.mxu0 0.0
        %568 = vmatpush1.msra.mxu0 0.0
        %569 = vmatprep.subr.mxu0 0.0
        %570 = vmatpush1.msra.mxu0 0.0
        %571 = vmatprep.subr.mxu0 0.0
        %572 = vmatpush1.msra.mxu0 0.0
        %573 = vmatprep.subr.mxu0 0.0
        %574 = vmatpush1.msra.mxu0 0.0
        %575 = vmatprep.subr.mxu0 0.0
        %576 = vmatpush1.msra.mxu0 0.0
        %577 = vmatprep.subr.mxu0 0.0
        %578 = vmatpush1.msra.mxu0 0.0
        %579 = vmatprep.subr.mxu0 0.0
        %580 = vmatpush1.msra.mxu0 0.0
        %581 = vmatprep.subr.mxu0 0.0
        %582 = vmatpush1.msra.mxu0 0.0
        %583 = vmatprep.mubr.f32.mxu0 0.0
        %584 = vmatmul.mubr.f32.gmra.mrb[0].mxu0 %v493
        %v585 = vpop.f32.mrb[0].mxu0
        %v586 = vadd.f32 %v517, %v585
        %v587 = vpop.f32.mrb[0].mxu0
        %588 = vdwg.mxu0
        %v589 = vmax.f32 %v586, 0.0
        %s590 = scalar_lea.vmem [#allocation5], 512
        %v591 = vld [vmem:[%s590] sm:$0xff]
        %v592 = vld [vmem:[%s590 + $0x8] sm:$0xff]
        %v593 = vld [vmem:[%s590 + $0x10] sm:$0xff]
        %v594 = vld [vmem:[%s590 + $0x18] sm:$0xff]
        %v595 = vld [vmem:[%s590 + $0x20] sm:$0xff]
        %v596 = vld [vmem:[%s590 + $0x28] sm:$0xff]
        %v597 = vld [vmem:[%s590 + $0x30] sm:$0xff]
        %v598 = vld [vmem:[%s590 + $0x38] sm:$0xff]
        %v599 = vld [vmem:[%s590 + $0x40] sm:$0xff]
        %v600 = vld [vmem:[%s590 + $0x48] sm:$0xff]
        %v601 = vld [vmem:[%s590 + $0x50] sm:$0xff]
        %v602 = vld [vmem:[%s590 + $0x58] sm:$0xff]
        %v603 = vld [vmem:[%s590 + $0x60] sm:$0xff]
        %v604 = vld [vmem:[%s590 + $0x68] sm:$0xff]
        %v605 = vld [vmem:[%s590 + $0x70] sm:$0xff]
        %v606 = vld [vmem:[%s590 + $0x78] sm:$0xff]
        %s607 = scalar_lea.vmem [#allocation7], 4
        %v608 = vld [vmem:[%s607] sm:$0x1]
        %v610 = vlaneseq
        %v611 = vshrl.u32 %v610, 7
        %v612 = vsub.s32 0, %v611
        %v613 = vrot.slane %v608, %v612
        %615 = vmatprep.subr.mxu0 0.0
        %616 = vmatpush1.msra.mxu0 %v591
        %617 = vmatprep.subr.mxu0 0.0
        %618 = vmatpush1.msra.mxu0 %v592
        %619 = vmatprep.subr.mxu0 0.0
        %620 = vmatpush1.msra.mxu0 %v593
        %621 = vmatprep.subr.mxu0 0.0
        %622 = vmatpush1.msra.mxu0 %v594
        %623 = vmatprep.subr.mxu0 0.0
        %624 = vmatpush1.msra.mxu0 %v595
        %625 = vmatprep.subr.mxu0 0.0
        %626 = vmatpush1.msra.mxu0 %v596
        %627 = vmatprep.subr.mxu0 0.0
        %628 = vmatpush1.msra.mxu0 %v597
        %629 = vmatprep.subr.mxu0 0.0
        %630 = vmatpush1.msra.mxu0 %v598
        %631 = vmatprep.subr.mxu0 0.0
        %632 = vmatpush1.msra.mxu0 %v599
        %633 = vmatprep.subr.mxu0 0.0
        %634 = vmatpush1.msra.mxu0 %v600
        %635 = vmatprep.subr.mxu0 0.0
        %636 = vmatpush1.msra.mxu0 %v601
        %637 = vmatprep.subr.mxu0 0.0
        %638 = vmatpush1.msra.mxu0 %v602
        %639 = vmatprep.subr.mxu0 0.0
        %640 = vmatpush1.msra.mxu0 %v603
        %641 = vmatprep.subr.mxu0 0.0
        %642 = vmatpush1.msra.mxu0 %v604
        %643 = vmatprep.subr.mxu0 0.0
        %644 = vmatpush1.msra.mxu0 %v605
        %645 = vmatprep.subr.mxu0 0.0
        %646 = vmatpush1.msra.mxu0 %v606
        %647 = vmatprep.subr.mxu0 0.0
        %648 = vmatpush1.msra.mxu0 0.0
        %649 = vmatprep.subr.mxu0 0.0
        %650 = vmatpush1.msra.mxu0 0.0
        %651 = vmatprep.subr.mxu0 0.0
        %652 = vmatpush1.msra.mxu0 0.0
        %653 = vmatprep.subr.mxu0 0.0
        %654 = vmatpush1.msra.mxu0 0.0
        %655 = vmatprep.subr.mxu0 0.0
        %656 = vmatpush1.msra.mxu0 0.0
        %657 = vmatprep.subr.mxu0 0.0
        %658 = vmatpush1.msra.mxu0 0.0
        %659 = vmatprep.subr.mxu0 0.0
        %660 = vmatpush1.msra.mxu0 0.0
        %661 = vmatprep.subr.mxu0 0.0
        %662 = vmatpush1.msra.mxu0 0.0
        %663 = vmatprep.subr.mxu0 0.0
        %664 = vmatpush1.msra.mxu0 0.0
        %665 = vmatprep.subr.mxu0 0.0
        %666 = vmatpush1.msra.mxu0 0.0
        %667 = vmatprep.subr.mxu0 0.0
        %668 = vmatpush1.msra.mxu0 0.0
        %669 = vmatprep.subr.mxu0 0.0
        %670 = vmatpush1.msra.mxu0 0.0
        %671 = vmatprep.subr.mxu0 0.0
        %672 = vmatpush1.msra.mxu0 0.0
        %673 = vmatprep.subr.mxu0 0.0
        %674 = vmatpush1.msra.mxu0 0.0
        %675 = vmatprep.subr.mxu0 0.0
        %676 = vmatpush1.msra.mxu0 0.0
        %677 = vmatprep.subr.mxu0 0.0
        %678 = vmatpush1.msra.mxu0 0.0
        %679 = vmatprep.mubr.f32.mxu0 0.0
        %680 = vmatmul.mubr.f32.gmra.mrb[0].mxu0 %v589
        %v681 = vpop.f32.mrb[0].mxu0
        %v682 = vadd.f32 %v613, %v681
        %v683 = vpop.f32.mrb[0].mxu0
        %684 = vdwg.mxu0
        %v685 = vmax.f32 %v682, 0.0
        %s686 = scalar_lea.vmem [#allocation5], 640
        %v687 = vld [vmem:[%s686] sm:$0xff]
        %v688 = vld [vmem:[%s686 + $0x8] sm:$0xff]
        %v689 = vld [vmem:[%s686 + $0x10] sm:$0xff]
        %v690 = vld [vmem:[%s686 + $0x18] sm:$0xff]
        %v691 = vld [vmem:[%s686 + $0x20] sm:$0xff]
        %v692 = vld [vmem:[%s686 + $0x28] sm:$0xff]
        %v693 = vld [vmem:[%s686 + $0x30] sm:$0xff]
        %v694 = vld [vmem:[%s686 + $0x38] sm:$0xff]
        %v695 = vld [vmem:[%s686 + $0x40] sm:$0xff]
        %v696 = vld [vmem:[%s686 + $0x48] sm:$0xff]
        %v697 = vld [vmem:[%s686 + $0x50] sm:$0xff]
        %v698 = vld [vmem:[%s686 + $0x58] sm:$0xff]
        %v699 = vld [vmem:[%s686 + $0x60] sm:$0xff]
        %v700 = vld [vmem:[%s686 + $0x68] sm:$0xff]
        %v701 = vld [vmem:[%s686 + $0x70] sm:$0xff]
        %v702 = vld [vmem:[%s686 + $0x78] sm:$0xff]
        %s703 = scalar_lea.vmem [#allocation7], 5
        %v704 = vld [vmem:[%s703] sm:$0x1]
        %v706 = vlaneseq
        %v707 = vshrl.u32 %v706, 7
        %v708 = vsub.s32 0, %v707
        %v709 = vrot.slane %v704, %v708
        %711 = vmatprep.subr.mxu0 0.0
        %712 = vmatpush1.msra.mxu0 %v687
        %713 = vmatprep.subr.mxu0 0.0
        %714 = vmatpush1.msra.mxu0 %v688
        %715 = vmatprep.subr.mxu0 0.0
        %716 = vmatpush1.msra.mxu0 %v689
        %717 = vmatprep.subr.mxu0 0.0
        %718 = vmatpush1.msra.mxu0 %v690
        %719 = vmatprep.subr.mxu0 0.0
        %720 = vmatpush1.msra.mxu0 %v691
        %721 = vmatprep.subr.mxu0 0.0
        %722 = vmatpush1.msra.mxu0 %v692
        %723 = vmatprep.subr.mxu0 0.0
        %724 = vmatpush1.msra.mxu0 %v693
        %725 = vmatprep.subr.mxu0 0.0
        %726 = vmatpush1.msra.mxu0 %v694
        %727 = vmatprep.subr.mxu0 0.0
        %728 = vmatpush1.msra.mxu0 %v695
        %729 = vmatprep.subr.mxu0 0.0
        %730 = vmatpush1.msra.mxu0 %v696
        %731 = vmatprep.subr.mxu0 0.0
        %732 = vmatpush1.msra.mxu0 %v697
        %733 = vmatprep.subr.mxu0 0.0
        %734 = vmatpush1.msra.mxu0 %v698
        %735 = vmatprep.subr.mxu0 0.0
        %736 = vmatpush1.msra.mxu0 %v699
        %737 = vmatprep.subr.mxu0 0.0
        %738 = vmatpush1.msra.mxu0 %v700
        %739 = vmatprep.subr.mxu0 0.0
        %740 = vmatpush1.msra.mxu0 %v701
        %741 = vmatprep.subr.mxu0 0.0
        %742 = vmatpush1.msra.mxu0 %v702
        %743 = vmatprep.subr.mxu0 0.0
        %744 = vmatpush1.msra.mxu0 0.0
        %745 = vmatprep.subr.mxu0 0.0
        %746 = vmatpush1.msra.mxu0 0.0
        %747 = vmatprep.subr.mxu0 0.0
        %748 = vmatpush1.msra.mxu0 0.0
        %749 = vmatprep.subr.mxu0 0.0
        %750 = vmatpush1.msra.mxu0 0.0
        %751 = vmatprep.subr.mxu0 0.0
        %752 = vmatpush1.msra.mxu0 0.0
        %753 = vmatprep.subr.mxu0 0.0
        %754 = vmatpush1.msra.mxu0 0.0
        %755 = vmatprep.subr.mxu0 0.0
        %756 = vmatpush1.msra.mxu0 0.0
        %757 = vmatprep.subr.mxu0 0.0
        %758 = vmatpush1.msra.mxu0 0.0
        %759 = vmatprep.subr.mxu0 0.0
        %760 = vmatpush1.msra.mxu0 0.0
        %761 = vmatprep.subr.mxu0 0.0
        %762 = vmatpush1.msra.mxu0 0.0
        %763 = vmatprep.subr.mxu0 0.0
        %764 = vmatpush1.msra.mxu0 0.0
        %765 = vmatprep.subr.mxu0 0.0
        %766 = vmatpush1.msra.mxu0 0.0
        %767 = vmatprep.subr.mxu0 0.0
        %768 = vmatpush1.msra.mxu0 0.0
        %769 = vmatprep.subr.mxu0 0.0
        %770 = vmatpush1.msra.mxu0 0.0
        %771 = vmatprep.subr.mxu0 0.0
        %772 = vmatpush1.msra.mxu0 0.0
        %773 = vmatprep.subr.mxu0 0.0
        %774 = vmatpush1.msra.mxu0 0.0
        %775 = vmatprep.mubr.f32.mxu0 0.0
        %776 = vmatmul.mubr.f32.gmra.mrb[0].mxu0 %v685
        %v777 = vpop.f32.mrb[0].mxu0
        %v778 = vadd.f32 %v709, %v777
        %v779 = vpop.f32.mrb[0].mxu0
        %780 = vdwg.mxu0
        %v781 = vmax.f32 %v778, 0.0
        %s782 = scalar_lea.vmem [#allocation5], 768
        %v783 = vld [vmem:[%s782] sm:$0xff]
        %v784 = vld [vmem:[%s782 + $0x8] sm:$0xff]
        %v785 = vld [vmem:[%s782 + $0x10] sm:$0xff]
        %v786 = vld [vmem:[%s782 + $0x18] sm:$0xff]
        %v787 = vld [vmem:[%s782 + $0x20] sm:$0xff]
        %v788 = vld [vmem:[%s782 + $0x28] sm:$0xff]
        %v789 = vld [vmem:[%s782 + $0x30] sm:$0xff]
        %v790 = vld [vmem:[%s782 + $0x38] sm:$0xff]
        %v791 = vld [vmem:[%s782 + $0x40] sm:$0xff]
        %v792 = vld [vmem:[%s782 + $0x48] sm:$0xff]
        %v793 = vld [vmem:[%s782 + $0x50] sm:$0xff]
        %v794 = vld [vmem:[%s782 + $0x58] sm:$0xff]
        %v795 = vld [vmem:[%s782 + $0x60] sm:$0xff]
        %v796 = vld [vmem:[%s782 + $0x68] sm:$0xff]
        %v797 = vld [vmem:[%s782 + $0x70] sm:$0xff]
        %v798 = vld [vmem:[%s782 + $0x78] sm:$0xff]
        %s799 = scalar_lea.vmem [#allocation7], 6
        %v800 = vld [vmem:[%s799] sm:$0x1]
        %v802 = vlaneseq
        %v803 = vshrl.u32 %v802, 7
        %v804 = vsub.s32 0, %v803
        %v805 = vrot.slane %v800, %v804
        %807 = vmatprep.subr.mxu0 0.0
        %808 = vmatpush1.msra.mxu0 %v783
        %809 = vmatprep.subr.mxu0 0.0
        %810 = vmatpush1.msra.mxu0 %v784
        %811 = vmatprep.subr.mxu0 0.0
        %812 = vmatpush1.msra.mxu0 %v785
        %813 = vmatprep.subr.mxu0 0.0
        %814 = vmatpush1.msra.mxu0 %v786
        %815 = vmatprep.subr.mxu0 0.0
        %816 = vmatpush1.msra.mxu0 %v787
        %817 = vmatprep.subr.mxu0 0.0
        %818 = vmatpush1.msra.mxu0 %v788
        %819 = vmatprep.subr.mxu0 0.0
        %820 = vmatpush1.msra.mxu0 %v789
        %821 = vmatprep.subr.mxu0 0.0
        %822 = vmatpush1.msra.mxu0 %v790
        %823 = vmatprep.subr.mxu0 0.0
        %824 = vmatpush1.msra.mxu0 %v791
        %825 = vmatprep.subr.mxu0 0.0
        %826 = vmatpush1.msra.mxu0 %v792
        %827 = vmatprep.subr.mxu0 0.0
        %828 = vmatpush1.msra.mxu0 %v793
        %829 = vmatprep.subr.mxu0 0.0
        %830 = vmatpush1.msra.mxu0 %v794
        %831 = vmatprep.subr.mxu0 0.0
        %832 = vmatpush1.msra.mxu0 %v795
        %833 = vmatprep.subr.mxu0 0.0
        %834 = vmatpush1.msra.mxu0 %v796
        %835 = vmatprep.subr.mxu0 0.0
        %836 = vmatpush1.msra.mxu0 %v797
        %837 = vmatprep.subr.mxu0 0.0
        %838 = vmatpush1.msra.mxu0 %v798
        %839 = vmatprep.subr.mxu0 0.0
        %840 = vmatpush1.msra.mxu0 0.0
        %841 = vmatprep.subr.mxu0 0.0
        %842 = vmatpush1.msra.mxu0 0.0
        %843 = vmatprep.subr.mxu0 0.0
        %844 = vmatpush1.msra.mxu0 0.0
        %845 = vmatprep.subr.mxu0 0.0
        %846 = vmatpush1.msra.mxu0 0.0
        %847 = vmatprep.subr.mxu0 0.0
        %848 = vmatpush1.msra.mxu0 0.0
        %849 = vmatprep.subr.mxu0 0.0
        %850 = vmatpush1.msra.mxu0 0.0
        %851 = vmatprep.subr.mxu0 0.0
        %852 = vmatpush1.msra.mxu0 0.0
        %853 = vmatprep.subr.mxu0 0.0
        %854 = vmatpush1.msra.mxu0 0.0
        %855 = vmatprep.subr.mxu0 0.0
        %856 = vmatpush1.msra.mxu0 0.0
        %857 = vmatprep.subr.mxu0 0.0
        %858 = vmatpush1.msra.mxu0 0.0
        %859 = vmatprep.subr.mxu0 0.0
        %860 = vmatpush1.msra.mxu0 0.0
        %861 = vmatprep.subr.mxu0 0.0
        %862 = vmatpush1.msra.mxu0 0.0
        %863 = vmatprep.subr.mxu0 0.0
        %864 = vmatpush1.msra.mxu0 0.0
        %865 = vmatprep.subr.mxu0 0.0
        %866 = vmatpush1.msra.mxu0 0.0
        %867 = vmatprep.subr.mxu0 0.0
        %868 = vmatpush1.msra.mxu0 0.0
        %869 = vmatprep.subr.mxu0 0.0
        %870 = vmatpush1.msra.mxu0 0.0
        %871 = vmatprep.mubr.f32.mxu0 0.0
        %872 = vmatmul.mubr.f32.gmra.mrb[0].mxu0 %v781
        %v873 = vpop.f32.mrb[0].mxu0
        %v874 = vadd.f32 %v805, %v873
        %v875 = vpop.f32.mrb[0].mxu0
        %876 = vdwg.mxu0
        %v877 = vmax.f32 %v874, 0.0
        %s878 = scalar_lea.vmem [#allocation5], 896
        %v879 = vld [vmem:[%s878] sm:$0xff]
        %v880 = vld [vmem:[%s878 + $0x8] sm:$0xff]
        %v881 = vld [vmem:[%s878 + $0x10] sm:$0xff]
        %v882 = vld [vmem:[%s878 + $0x18] sm:$0xff]
        %v883 = vld [vmem:[%s878 + $0x20] sm:$0xff]
        %v884 = vld [vmem:[%s878 + $0x28] sm:$0xff]
        %v885 = vld [vmem:[%s878 + $0x30] sm:$0xff]
        %v886 = vld [vmem:[%s878 + $0x38] sm:$0xff]
        %v887 = vld [vmem:[%s878 + $0x40] sm:$0xff]
        %v888 = vld [vmem:[%s878 + $0x48] sm:$0xff]
        %v889 = vld [vmem:[%s878 + $0x50] sm:$0xff]
        %v890 = vld [vmem:[%s878 + $0x58] sm:$0xff]
        %v891 = vld [vmem:[%s878 + $0x60] sm:$0xff]
        %v892 = vld [vmem:[%s878 + $0x68] sm:$0xff]
        %v893 = vld [vmem:[%s878 + $0x70] sm:$0xff]
        %v894 = vld [vmem:[%s878 + $0x78] sm:$0xff]
        %s895 = scalar_lea.vmem [#allocation7], 7
        %v896 = vld [vmem:[%s895] sm:$0x1]
        %v898 = vlaneseq
        %v899 = vshrl.u32 %v898, 7
        %v900 = vsub.s32 0, %v899
        %v901 = vrot.slane %v896, %v900
        %903 = vmatprep.subr.mxu0 0.0
        %904 = vmatpush1.msra.mxu0 %v879
        %905 = vmatprep.subr.mxu0 0.0
        %906 = vmatpush1.msra.mxu0 %v880
        %907 = vmatprep.subr.mxu0 0.0
        %908 = vmatpush1.msra.mxu0 %v881
        %909 = vmatprep.subr.mxu0 0.0
        %910 = vmatpush1.msra.mxu0 %v882
        %911 = vmatprep.subr.mxu0 0.0
        %912 = vmatpush1.msra.mxu0 %v883
        %913 = vmatprep.subr.mxu0 0.0
        %914 = vmatpush1.msra.mxu0 %v884
        %915 = vmatprep.subr.mxu0 0.0
        %916 = vmatpush1.msra.mxu0 %v885
        %917 = vmatprep.subr.mxu0 0.0
        %918 = vmatpush1.msra.mxu0 %v886
        %919 = vmatprep.subr.mxu0 0.0
        %920 = vmatpush1.msra.mxu0 %v887
        %921 = vmatprep.subr.mxu0 0.0
        %922 = vmatpush1.msra.mxu0 %v888
        %923 = vmatprep.subr.mxu0 0.0
        %924 = vmatpush1.msra.mxu0 %v889
        %925 = vmatprep.subr.mxu0 0.0
        %926 = vmatpush1.msra.mxu0 %v890
        %927 = vmatprep.subr.mxu0 0.0
        %928 = vmatpush1.msra.mxu0 %v891
        %929 = vmatprep.subr.mxu0 0.0
        %930 = vmatpush1.msra.mxu0 %v892
        %931 = vmatprep.subr.mxu0 0.0
        %932 = vmatpush1.msra.mxu0 %v893
        %933 = vmatprep.subr.mxu0 0.0
        %934 = vmatpush1.msra.mxu0 %v894
        %935 = vmatprep.subr.mxu0 0.0
        %936 = vmatpush1.msra.mxu0 0.0
        %937 = vmatprep.subr.mxu0 0.0
        %938 = vmatpush1.msra.mxu0 0.0
        %939 = vmatprep.subr.mxu0 0.0
        %940 = vmatpush1.msra.mxu0 0.0
        %941 = vmatprep.subr.mxu0 0.0
        %942 = vmatpush1.msra.mxu0 0.0
        %943 = vmatprep.subr.mxu0 0.0
        %944 = vmatpush1.msra.mxu0 0.0
        %945 = vmatprep.subr.mxu0 0.0
        %946 = vmatpush1.msra.mxu0 0.0
        %947 = vmatprep.subr.mxu0 0.0
        %948 = vmatpush1.msra.mxu0 0.0
        %949 = vmatprep.subr.mxu0 0.0
        %950 = vmatpush1.msra.mxu0 0.0
        %951 = vmatprep.subr.mxu0 0.0
        %952 = vmatpush1.msra.mxu0 0.0
        %953 = vmatprep.subr.mxu0 0.0
        %954 = vmatpush1.msra.mxu0 0.0
        %955 = vmatprep.subr.mxu0 0.0
        %956 = vmatpush1.msra.mxu0 0.0
        %957 = vmatprep.subr.mxu0 0.0
        %958 = vmatpush1.msra.mxu0 0.0
        %959 = vmatprep.subr.mxu0 0.0
        %960 = vmatpush1.msra.mxu0 0.0
        %961 = vmatprep.subr.mxu0 0.0
        %962 = vmatpush1.msra.mxu0 0.0
        %963 = vmatprep.subr.mxu0 0.0
        %964 = vmatpush1.msra.mxu0 0.0
        %965 = vmatprep.subr.mxu0 0.0
        %966 = vmatpush1.msra.mxu0 0.0
        %967 = vmatprep.mubr.f32.mxu0 0.0
        %968 = vmatmul.mubr.f32.gmra.mrb[0].mxu0 %v877
        %v969 = vpop.f32.mrb[0].mxu0
        %v970 = vadd.f32 %v901, %v969
        %v971 = vpop.f32.mrb[0].mxu0
        %972 = vdwg.mxu0
        %v973 = vmax.f32 %v970, 0.0
        %s974 = scalar_lea.vmem [#allocation5], 1024
        %v975 = vld [vmem:[%s974] sm:$0xff]
        %v976 = vld [vmem:[%s974 + $0x8] sm:$0xff]
        %v977 = vld [vmem:[%s974 + $0x10] sm:$0xff]
        %v978 = vld [vmem:[%s974 + $0x18] sm:$0xff]
        %v979 = vld [vmem:[%s974 + $0x20] sm:$0xff]
        %v980 = vld [vmem:[%s974 + $0x28] sm:$0xff]
        %v981 = vld [vmem:[%s974 + $0x30] sm:$0xff]
        %v982 = vld [vmem:[%s974 + $0x38] sm:$0xff]
        %v983 = vld [vmem:[%s974 + $0x40] sm:$0xff]
        %v984 = vld [vmem:[%s974 + $0x48] sm:$0xff]
        %v985 = vld [vmem:[%s974 + $0x50] sm:$0xff]
        %v986 = vld [vmem:[%s974 + $0x58] sm:$0xff]
        %v987 = vld [vmem:[%s974 + $0x60] sm:$0xff]
        %v988 = vld [vmem:[%s974 + $0x68] sm:$0xff]
        %v989 = vld [vmem:[%s974 + $0x70] sm:$0xff]
        %v990 = vld [vmem:[%s974 + $0x78] sm:$0xff]
        %s991 = scalar_lea.vmem [#allocation7], 8
        %v992 = vld [vmem:[%s991] sm:$0x1]
        %v994 = vlaneseq
        %v995 = vshrl.u32 %v994, 7
        %v996 = vsub.s32 0, %v995
        %v997 = vrot.slane %v992, %v996
        %999 = vmatprep.subr.mxu0 0.0
        %1000 = vmatpush1.msra.mxu0 %v975
        %1001 = vmatprep.subr.mxu0 0.0
        %1002 = vmatpush1.msra.mxu0 %v976
        %1003 = vmatprep.subr.mxu0 0.0
        %1004 = vmatpush1.msra.mxu0 %v977
        %1005 = vmatprep.subr.mxu0 0.0
        %1006 = vmatpush1.msra.mxu0 %v978
        %1007 = vmatprep.subr.mxu0 0.0
        %1008 = vmatpush1.msra.mxu0 %v979
        %1009 = vmatprep.subr.mxu0 0.0
        %1010 = vmatpush1.msra.mxu0 %v980
        %1011 = vmatprep.subr.mxu0 0.0
        %1012 = vmatpush1.msra.mxu0 %v981
        %1013 = vmatprep.subr.mxu0 0.0
        %1014 = vmatpush1.msra.mxu0 %v982
        %1015 = vmatprep.subr.mxu0 0.0
        %1016 = vmatpush1.msra.mxu0 %v983
        %1017 = vmatprep.subr.mxu0 0.0
        %1018 = vmatpush1.msra.mxu0 %v984
        %1019 = vmatprep.subr.mxu0 0.0
        %1020 = vmatpush1.msra.mxu0 %v985
        %1021 = vmatprep.subr.mxu0 0.0
        %1022 = vmatpush1.msra.mxu0 %v986
        %1023 = vmatprep.subr.mxu0 0.0
        %1024 = vmatpush1.msra.mxu0 %v987
        %1025 = vmatprep.subr.mxu0 0.0
        %1026 = vmatpush1.msra.mxu0 %v988
        %1027 = vmatprep.subr.mxu0 0.0
        %1028 = vmatpush1.msra.mxu0 %v989
        %1029 = vmatprep.subr.mxu0 0.0
        %1030 = vmatpush1.msra.mxu0 %v990
        %1031 = vmatprep.subr.mxu0 0.0
        %1032 = vmatpush1.msra.mxu0 0.0
        %1033 = vmatprep.subr.mxu0 0.0
        %1034 = vmatpush1.msra.mxu0 0.0
        %1035 = vmatprep.subr.mxu0 0.0
        %1036 = vmatpush1.msra.mxu0 0.0
        %1037 = vmatprep.subr.mxu0 0.0
        %1038 = vmatpush1.msra.mxu0 0.0
        %1039 = vmatprep.subr.mxu0 0.0
        %1040 = vmatpush1.msra.mxu0 0.0
        %1041 = vmatprep.subr.mxu0 0.0
        %1042 = vmatpush1.msra.mxu0 0.0
        %1043 = vmatprep.subr.mxu0 0.0
        %1044 = vmatpush1.msra.mxu0 0.0
        %1045 = vmatprep.subr.mxu0 0.0
        %1046 = vmatpush1.msra.mxu0 0.0
        %1047 = vmatprep.subr.mxu0 0.0
        %1048 = vmatpush1.msra.mxu0 0.0
        %1049 = vmatprep.subr.mxu0 0.0
        %1050 = vmatpush1.msra.mxu0 0.0
        %1051 = vmatprep.subr.mxu0 0.0
        %1052 = vmatpush1.msra.mxu0 0.0
        %1053 = vmatprep.subr.mxu0 0.0
        %1054 = vmatpush1.msra.mxu0 0.0
        %1055 = vmatprep.subr.mxu0 0.0
        %1056 = vmatpush1.msra.mxu0 0.0
        %1057 = vmatprep.subr.mxu0 0.0
        %1058 = vmatpush1.msra.mxu0 0.0
        %1059 = vmatprep.subr.mxu0 0.0
        %1060 = vmatpush1.msra.mxu0 0.0
        %1061 = vmatprep.subr.mxu0 0.0
        %1062 = vmatpush1.msra.mxu0 0.0
        %1063 = vmatprep.mubr.f32.mxu0 0.0
        %1064 = vmatmul.mubr.f32.gmra.mrb[0].mxu0 %v973
        %v1065 = vpop.f32.mrb[0].mxu0
        %v1066 = vadd.f32 %v997, %v1065
        %v1067 = vpop.f32.mrb[0].mxu0
        %1068 = vdwg.mxu0
        %vm1069 = vcmask 130048
        %1070 = vst.msk [vmem:[%s214] sm:$0xff] %vm1069, %v1066
        %s1071 = sand.u32 %s97, 1
        %s1072 = scalar_lea.sflag [#allocation4], %s1071
        %s1073 = sand.u32 %s97, 1
        %s1074 = smul.addr %s1073, 8
        %s1075 = scalar_lea.vmem [#allocation8], %s1074
        // Predicated region
        $region45: #{tpu_custom_call.1} parent=31 // pred_check
          %p1076 = pneg %p107
        $region46: #{tpu_custom_call.1} parent=31 // pred_check_branch
          %1078 = sbr.rel (%p1076) target = $region48
        $region47: #{tpu_custom_call.1} parent=31 // pred_region
          %s1080 = ssub.s32 128, 128
          %1081 = vsyncadd %s1072, %s1080
          %s1082 = smul.addr %s21, 128
          %s1083 = scalar_lea.hbm %s3, %s1082
          %s1085 = sshll.u32 %s1075, 4
          %s1086 = int_to_ptr.vmem [resolvable:$true] %s1085
          %1088 = dma.vmem_to_hbm [thread:$0]  %s1086, 128, %s1083, %s1072
        $region48: #{tpu_custom_call.1} parent=31 // pred_fallthru
          _
      $region32: #{tpu_custom_call.1} parent=5 // pred_fallthru
        _
      %p1089 = scmp.le.s32.totalorder 2, %s16
      // Predicated region
      $region49: #{tpu_custom_call.1} parent=5 // pred_check
        %p1090 = pneg %p1089
      $region50: #{tpu_custom_call.1} parent=5 // pred_check_branch
        %1092 = sbr.rel (%p1090) target = $region52
      $region51: #{tpu_custom_call.1} parent=5 // pred_region
        %s1093 = ssub.s32 %s16, 2
        // Predicated region
        $region53: #{tpu_custom_call.1} parent=51 // pred_check
          %p1094 = pneg %p113
        $region54: #{tpu_custom_call.1} parent=51 // pred_check_branch
          %1096 = sbr.rel (%p1094) target = $region56
        $region55: #{tpu_custom_call.1} parent=51 // pred_region
          %s1097 = sand.u32 %s98, 1
          %s1098 = scalar_lea.sflag [#allocation4], %s1097
          %s1099 = sand.u32 %s98, 1
          %s1100 = smul.addr %s1099, 8
          %s1101 = scalar_lea.vmem [#allocation8], %s1100
          %1102 = dma.done %s1098, 128
        $region56: #{tpu_custom_call.1} parent=51 // pred_fallthru
          _
      $region52: #{tpu_custom_call.1} parent=5 // pred_fallthru
        _
    $region6: #{tpu_custom_call.1} parent=1 // loop_footer
      %s20 = sadd.s32 1, %s16
    $region7: #{tpu_custom_call.1} parent=1 // loop_footer_branch
      %15 = sbr.rel target = $region3
    $region8: #{tpu_custom_call.1} parent=1 // loop_exit
      _
    %1103 = vsyncpa [#allocation3], 1
    %s1104 = scalar_lea.sflag [#allocation3], 1
    %1105 = vsyncpa %s1104, 1
    %1106 = vsyncpa [#allocation6], 1
    %1107 = vsyncpa [#allocation4], 1
    %s1108 = scalar_lea.sflag [#allocation4], 1
    %1109 = vsyncpa %s1108, 1

</llo_original>
